<compile_context>
chip_gen: v5e
topology: v5e:2x2
jax: 0.10.0
libtpu: 0.0.40
codegen_flags: <defaults>
</compile_context>

<pallas_src>
import jax
import jax.numpy as jnp
from jax.experimental import pallas as pl
from jax.experimental.pallas import tpu as pltpu


def _round_up(x, m):
    return ((x + m - 1) // m) * m


def _pick_tile(padded_dim, candidates):
    """Largest candidate tile that evenly divides the padded dimension."""
    for c in candidates:
        if padded_dim % c == 0:
            return c
    return padded_dim


def lbr_kernel(x_ref, wt_ref, scale_ref, shift_ref, o_ref, acc_ref):
    k = pl.program_id(2)

    @pl.when(k == 0)
    def _init():
        acc_ref[...] = jnp.zeros_like(acc_ref)

    # Linear: (tm, tk) @ (tk, tn) on the MXU, accumulate in f32.
    acc_ref[...] += jnp.dot(x_ref[...], wt_ref[...],
                            preferred_element_type=jnp.float32)

    @pl.when(k == pl.num_programs(2) - 1)
    def _finalize():
        # Folded (bias + BatchNorm eval) affine, then ReLU.  Epilogue stays in
        # f32 on the accumulator (supported on all of v5e/v6e/v7x VPUs).
        y = acc_ref[...] * scale_ref[...] + shift_ref[...]
        y = jnp.maximum(y, 0.0)
        o_ref[...] = y.astype(o_ref.dtype)   # Dropout(eval) == identity


def lbr_forward(x, w, b, gamma, beta, running_mean, running_var, eps=1e-5):
    """x: (N, in_features); w: (out_features, in_features) like nn.Linear."""
    N, K = x.shape
    M = w.shape[0]

    # Fold BatchNorm (eval) and the linear bias into one per-feature affine:
    #   (x @ W.T + b) * scale + shift == x @ W.T * scale + (b * scale + shift)
    scale = gamma / jnp.sqrt(running_var + eps)
    shift = b * scale + (beta - running_mean * scale)

    # Pad to TPU-friendly shapes: lanes (last dim) multiple of 128, sublanes
    # multiple of 8.  Zero padding is exact: padded K columns contribute 0 to
    # the dot, padded output rows/columns are sliced off before returning.
    Np = _round_up(N, 8)
    Kp = _round_up(K, 128)
    Mp = _round_up(M, 128)

    # Tile sizes: biggest that divides the padded dims, capped so that
    # 2*(tm*tk + tk*tn)*4B (double-buffered inputs) + tm*tn*4B (accumulator)
    # stays well within v7x's 64 MiB VMEM.  Small batch is not padded up to
    # 128 rows (zero rows would only waste MXU pushes); with tiny batches the
    # kernel is launch-overhead dominated regardless.
    tm = _pick_tile(Np, (256, 128, 64, 32, 16, 8))
    tn = _pick_tile(Mp, (512, 256, 128))
    tk = _pick_tile(Kp, (512, 256, 128))

    xp = jnp.zeros((Np, Kp), x.dtype).at[:N, :K].set(x)
    wtp = jnp.zeros((Kp, Mp), w.dtype).at[:K, :M].set(w.T)   # lane-dense features
    scale_p = jnp.zeros((1, Mp), jnp.float32).at[0, :M].set(scale.astype(jnp.float32))
    shift_p = jnp.zeros((1, Mp), jnp.float32).at[0, :M].set(shift.astype(jnp.float32))

    grid = (Np // tm, Mp // tn, Kp // tk)

    cost = pl.CostEstimate(
        flops=2 * Np * Kp * Mp,
        transcendentals=0,
        bytes_accessed=4 * (Np * Kp + Kp * Mp + Np * Mp + 2 * Mp),
    )

    out = pl.pallas_call(
        lbr_kernel,
        out_shape=jax.ShapeDtypeStruct((Np, Mp), x.dtype),
        grid=grid,
        in_specs=[
            pl.BlockSpec((tm, tk), lambda i, j, k: (i, k)),   # x tile
            pl.BlockSpec((tk, tn), lambda i, j, k: (k, j)),   # W.T tile
            pl.BlockSpec((1, tn), lambda i, j, k: (0, j)),    # scale slice
            pl.BlockSpec((1, tn), lambda i, j, k: (0, j)),    # shift slice
        ],
        out_specs=pl.BlockSpec((tm, tn), lambda i, j, k: (i, j)),
        scratch_shapes=[pltpu.VMEM((tm, tn), jnp.float32)],
        compiler_params=pltpu.CompilerParams(
            dimension_semantics=("parallel", "parallel", "arbitrary"),
            vmem_limit_bytes=32 * 1024 * 1024,
        ),
        cost_estimate=cost,
    )(xp, wtp, scale_p, shift_p)

    return out[:N, :M]


def lbr_reference(x, w, b, gamma, beta, running_mean, running_var, eps=1e-5):
    y = x @ w.T + b
    y = gamma * (y - running_mean) / jnp.sqrt(running_var + eps) + beta
    return jnp.maximum(y, 0.0)


if __name__ == "__main__":
    in_features, out_features, drop_prob = 32, 64, 0.1
    batch = 8

    key = jax.random.PRNGKey(0)
    kx, kw, kb, kg, kbeta = jax.random.split(key, 5)

    x = jax.random.normal(kx, (batch, in_features), dtype=jnp.float32)

    # nn.Linear init: U(-1/sqrt(in), 1/sqrt(in)) for weight and bias.
    bound = 1.0 / jnp.sqrt(jnp.float32(in_features))
    w = jax.random.uniform(kw, (out_features, in_features),
                           minval=-bound, maxval=bound, dtype=jnp.float32)
    b = jax.random.uniform(kb, (out_features,),
                           minval=-bound, maxval=bound, dtype=jnp.float32)

    # nn.BatchNorm1d init: gamma=1, beta=0, running_mean=0, running_var=1.
    # (Perturb gamma/beta deterministically so the BN path is exercised.)
    gamma = 1.0 + 0.1 * jax.random.normal(kg, (out_features,), dtype=jnp.float32)
    beta = 0.1 * jax.random.normal(kbeta, (out_features,), dtype=jnp.float32)
    running_mean = jnp.zeros((out_features,), dtype=jnp.float32)
    running_var = jnp.ones((out_features,), dtype=jnp.float32)

    out = lbr_forward(x, w, b, gamma, beta, running_mean, running_var)
    out = jax.block_until_ready(out)

    ref = lbr_reference(x, w, b, gamma, beta, running_mean, running_var)
    assert out.shape == (batch, out_features)
    assert jnp.allclose(out, ref, atol=1e-5, rtol=1e-5), "mismatch vs reference"

    print("KERNEL_OK")
</pallas_src>

<mosaic_0001>
module attributes {stable_mosaic.version = 11 : i64} {
  func.func @lbr_kernel(%arg0: i32, %arg1: i32, %arg2: i32, %arg3: memref<8x128xf32, #tpu.memory_space<vmem>>, %arg4: memref<128x128xf32, #tpu.memory_space<vmem>>, %arg5: memref<1x128xf32, #tpu.memory_space<vmem>>, %arg6: memref<1x128xf32, #tpu.memory_space<vmem>>, %arg7: memref<8x128xf32, #tpu.memory_space<vmem>>, %arg8: memref<8x128xf32, #tpu.memory_space<vmem>>) attributes {dimension_semantics = [#tpu.dimension_semantics<parallel>, #tpu.dimension_semantics<parallel>, #tpu.dimension_semantics<arbitrary>], iteration_bounds = array<i64: 1, 1, 1>, scalar_prefetch = 0 : i64, scratch_operands = 1 : i64, tpu.core_type = #tpu.core_type<tc>, window_params = [{transform_indices = @transform_0, window_bounds = array<i64: 8, 128>}, {transform_indices = @transform_1, window_bounds = array<i64: 128, 128>}, {transform_indices = @transform_2, window_bounds = array<i64: 1, 128>}, {transform_indices = @transform_3, window_bounds = array<i64: 1, 128>}, {transform_indices = @transform_4, window_bounds = array<i64: 8, 128>}]} {
    %c0_i32 = arith.constant 0 : i32
    %0 = arith.cmpi eq, %arg2, %c0_i32 : i32
    %1 = arith.extui %0 : i1 to i32
    %c0_i32_0 = arith.constant 0 : i32
    %2 = arith.cmpi ne, %1, %c0_i32_0 : i32
    scf.if %2 {
      %cst_10 = arith.constant 0.000000e+00 : f32
      %12 = vector.broadcast %cst_10 : f32 to vector<8x128xf32>
      %c0_11 = arith.constant 0 : index
      %c0_12 = arith.constant 0 : index
      %13 = vector.load %arg8[%c0_11, %c0_12] : memref<8x128xf32, #tpu.memory_space<vmem>>, vector<8x128xf32>
      tpu.vector_store %arg8[%c0_11, %c0_12], %12 {strides = array<i32>} : memref<8x128xf32, #tpu.memory_space<vmem>>, vector<8x128xf32>,
    } else {
    }
    %c0 = arith.constant 0 : index
    %c0_1 = arith.constant 0 : index
    %3 = vector.load %arg8[%c0, %c0_1] : memref<8x128xf32, #tpu.memory_space<vmem>>, vector<8x128xf32>
    %c0_2 = arith.constant 0 : index
    %c0_3 = arith.constant 0 : index
    %4 = vector.load %arg3[%c0_2, %c0_3] : memref<8x128xf32, #tpu.memory_space<vmem>>, vector<8x128xf32>
    %c0_4 = arith.constant 0 : index
    %c0_5 = arith.constant 0 : index
    %5 = vector.load %arg4[%c0_4, %c0_5] : memref<128x128xf32, #tpu.memory_space<vmem>>, vector<128x128xf32>
    %cst = arith.constant dense<0.000000e+00> : vector<8x128xf32>
    %6 = tpu.matmul %4, %5, %cst {dimension_numbers = #tpu.dot_dimension_numbers<[1], [0], [0], [1], [0, 0, 1, 1], [], []>} : vector<8x128xf32>, vector<128x128xf32>, vector<8x128xf32> -> vector<8x128xf32>
    %7 = arith.addf %3, %6 : vector<8x128xf32>
    %c0_6 = arith.constant 0 : index
    %c0_7 = arith.constant 0 : index
    %8 = vector.load %arg8[%c0_6, %c0_7] : memref<8x128xf32, #tpu.memory_space<vmem>>, vector<8x128xf32>
    tpu.vector_store %arg8[%c0_6, %c0_7], %7 {strides = array<i32>} : memref<8x128xf32, #tpu.memory_space<vmem>>, vector<8x128xf32>,
    %c0_i32_8 = arith.constant 0 : i32
    %9 = arith.cmpi eq, %arg2, %c0_i32_8 : i32
    %10 = arith.extui %9 : i1 to i32
    %c0_i32_9 = arith.constant 0 : i32
    %11 = arith.cmpi ne, %10, %c0_i32_9 : i32
    scf.if %11 {
      %c0_10 = arith.constant 0 : index
      %c0_11 = arith.constant 0 : index
      %12 = vector.load %arg8[%c0_10, %c0_11] : memref<8x128xf32, #tpu.memory_space<vmem>>, vector<8x128xf32>
      %c0_12 = arith.constant 0 : index
      %c0_13 = arith.constant 0 : index
      %13 = vector.load %arg5[%c0_12, %c0_13] : memref<1x128xf32, #tpu.memory_space<vmem>>, vector<1x128xf32>
      %14 = vector.broadcast %13 : vector<1x128xf32> to vector<8x128xf32>
      %15 = arith.mulf %12, %14 : vector<8x128xf32>
      %c0_14 = arith.constant 0 : index
      %c0_15 = arith.constant 0 : index
      %16 = vector.load %arg6[%c0_14, %c0_15] : memref<1x128xf32, #tpu.memory_space<vmem>>, vector<1x128xf32>
      %17 = vector.broadcast %16 : vector<1x128xf32> to vector<8x128xf32>
      %18 = arith.addf %15, %17 : vector<8x128xf32>
      %cst_16 = arith.constant 0.000000e+00 : f32
      %19 = vector.broadcast %cst_16 : f32 to vector<8x128xf32>
      %20 = arith.maximumf %18, %19 : vector<8x128xf32>
      %c0_17 = arith.constant 0 : index
      %c0_18 = arith.constant 0 : index
      %21 = vector.load %arg7[%c0_17, %c0_18] : memref<8x128xf32, #tpu.memory_space<vmem>>, vector<8x128xf32>
      tpu.vector_store %arg7[%c0_17, %c0_18], %20 {strides = array<i32>} : memref<8x128xf32, #tpu.memory_space<vmem>>, vector<8x128xf32>,
    } else {
    }
    return
  }
  func.func @transform_0(%arg0: i32, %arg1: i32, %arg2: i32) -> (i32, i32) {
    %c0_i32 = arith.constant 0 : i32
    return %arg0, %arg2 : i32, i32
  }
  func.func @transform_1(%arg0: i32, %arg1: i32, %arg2: i32) -> (i32, i32) {
    %c0_i32 = arith.constant 0 : i32
    return %arg2, %arg1 : i32, i32
  }
  func.func @transform_2(%arg0: i32, %arg1: i32, %arg2: i32) -> (i32, i32) {
    %c0_i32 = arith.constant 0 : i32
    %c0_i32_0 = arith.constant 0 : i32
    return %c0_i32, %arg1 : i32, i32
  }
  func.func @transform_3(%arg0: i32, %arg1: i32, %arg2: i32) -> (i32, i32) {
    %c0_i32 = arith.constant 0 : i32
    %c0_i32_0 = arith.constant 0 : i32
    return %c0_i32, %arg1 : i32, i32
  }
  func.func @transform_4(%arg0: i32, %arg1: i32, %arg2: i32) -> (i32, i32) {
    %c0_i32 = arith.constant 0 : i32
    return %arg0, %arg1 : i32, i32
  }
}

</mosaic_0001>

<llo_original>
// kernel: tpu_custom_call.1
$region0: #{tpu_custom_call.1}
  #allocation0 [shape = 'u32[]', space=smem, size = 0x4, offset = 0x4, fixed_abs, tag = 'smem constant byte address 0x4 - core index']
  #allocation1 [shape = 'u32[72,128]{1,0:T(1,128)}', space=vmem, size = 0x9000, scoped, tag = 'internal scratch']
  #allocation2 [shape = 'f32[8,128]{1,0:T(8,128)}', space=vmem, size = 0x1000, scoped, tag = 'scratch operand']
  %s0 = inlined_call_operand.hbm [shape: f32[8,128], index: 0, kind: input, shape index: {}]
  %s1 = inlined_call_operand.hbm [shape: f32[128,128], index: 1, kind: input, shape index: {}]
  %s2 = inlined_call_operand.vmem [shape: f32[1,128], index: 2, kind: input, shape index: {}]
  %s3 = inlined_call_operand.vmem [shape: f32[1,128], index: 3, kind: input, shape index: {}]
  %s4 = inlined_call_operand.hbm [shape: f32[8,128], index: 4, kind: output, shape index: {}]
  %s5 = sld [smem:[#allocation0]]
  $region42: #{tpu_custom_call.1} parent=0
    _
  %s7 = ssub.s32 1, %s5
  %s8 = scalar_select 0, %s7, %s5
  $region1: #{tpu_custom_call.1} parent=0
    #allocation3 [shape = 'u8[4096]{0}', space=vmem, size = 0x1000, scoped, tag = 'input window, operand 0, single buffered']
    #allocation4 [shape = 's32[1]{0}', space=sflag, size = 0x4, scoped, tag = 'scoped memory for tpu_custom_call.1']
    #allocation5 [shape = 's32[1]{0}', space=sflag, size = 0x4, scoped, tag = 'scoped memory for tpu_custom_call.1']
    #allocation6 [shape = 'u8[65536]{0}', space=vmem, size = 0x10000, scoped, tag = 'input window, operand 1, single buffered']
    #allocation7 [shape = 's32[1]{0}', space=sflag, size = 0x4, scoped, tag = 'scoped memory for tpu_custom_call.1']
    #allocation8 [shape = 'u8[4096]{0}', space=vmem, size = 0x1000, scoped, tag = 'output window, operand 0, single buffered']
    %9 = vsyncpa [#allocation4], 0
    %10 = vsyncpa [#allocation7], 0
    %11 = vsyncpa [#allocation5], 0
    // Predicated region
    $region2: #{tpu_custom_call.1} parent=1 // pred_check
      _
    $region3: #{tpu_custom_call.1} parent=1 // pred_check_branch
      %13 = sbr.rel (0) target = $region5
    $region4: #{tpu_custom_call.1} parent=1 // pred_region
      %15 = vsyncadd [#allocation4], 0
      %s17 = sshll.u32 %s0, 4
      %s18 = int_to_ptr.hbm [resolvable:$true] %s17
      %s19 = sshll.u32 [#allocation3], 4
      %s20 = int_to_ptr.vmem [resolvable:$true] %s19
      %22 = dma.hbm_to_vmem [thread:$0]  %s18, 128, %s20, [#allocation4]
    $region5: #{tpu_custom_call.1} parent=1 // pred_fallthru
      _
    // Predicated region
    $region6: #{tpu_custom_call.1} parent=1 // pred_check
      _
    $region7: #{tpu_custom_call.1} parent=1 // pred_check_branch
      %24 = sbr.rel (0) target = $region9
    $region8: #{tpu_custom_call.1} parent=1 // pred_region
      %26 = vsyncadd [#allocation7], 0
      %s27 = sshll.u32 %s1, 4
      %s28 = int_to_ptr.hbm [resolvable:$true] %s27
      %s29 = sshll.u32 [#allocation6], 4
      %s30 = int_to_ptr.vmem [resolvable:$true] %s29
      %35 = dma.hbm_to_vmem [thread:$0]  %s28, 2048, %s30, [#allocation7], 128, 128, 8
    $region9: #{tpu_custom_call.1} parent=1 // pred_fallthru
      _
    // Predicated region
    $region10: #{tpu_custom_call.1} parent=1 // pred_check
      _
    $region11: #{tpu_custom_call.1} parent=1 // pred_check_branch
      %37 = sbr.rel (0) target = $region13
    $region12: #{tpu_custom_call.1} parent=1 // pred_region
      _
    $region13: #{tpu_custom_call.1} parent=1 // pred_fallthru
      _
    // Predicated region
    $region14: #{tpu_custom_call.1} parent=1 // pred_check
      _
    $region15: #{tpu_custom_call.1} parent=1 // pred_check_branch
      %39 = sbr.rel (0) target = $region17
    $region16: #{tpu_custom_call.1} parent=1 // pred_region
      _
    $region17: #{tpu_custom_call.1} parent=1 // pred_fallthru
      _
    // Predicated region
    $region18: #{tpu_custom_call.1} parent=1 // pred_check
      _
    $region19: #{tpu_custom_call.1} parent=1 // pred_check_branch
      %41 = sbr.rel (0) target = $region21
    $region20: #{tpu_custom_call.1} parent=1 // pred_region
      %43 = dma.done [#allocation4], 128
    $region21: #{tpu_custom_call.1} parent=1 // pred_fallthru
      _
    // Predicated region
    $region22: #{tpu_custom_call.1} parent=1 // pred_check
      _
    $region23: #{tpu_custom_call.1} parent=1 // pred_check_branch
      %45 = sbr.rel (0) target = $region25
    $region24: #{tpu_custom_call.1} parent=1 // pred_region
      %47 = dma.done [#allocation7], 2048
    $region25: #{tpu_custom_call.1} parent=1 // pred_fallthru
      _
    %p48 = scmp.eq.s32.totalorder 0, 0
    // Predicated region
    $region26: #{tpu_custom_call.1} parent=1 // pred_check
      %p49 = pneg %p48
    $region27: #{tpu_custom_call.1} parent=1 // pred_check_branch
      %51 = sbr.rel (%p49) target = $region29
    $region28: #{tpu_custom_call.1} parent=1 // pred_region
      %52 = vst [vmem:[#allocation2] sm:$0xff] 0.0
    $region29: #{tpu_custom_call.1} parent=1 // pred_fallthru
      _
    %v53 = vld [vmem:[#allocation2] sm:$0xff]
    %v54 = vld [vmem:[#allocation3] sm:$0xff]
    %v55 = vld [vmem:[#allocation6] sm:$0xff]
    %v56 = vld [vmem:[#allocation6 + $0x8] sm:$0xff]
    %v57 = vld [vmem:[#allocation6 + $0x10] sm:$0xff]
    %v58 = vld [vmem:[#allocation6 + $0x18] sm:$0xff]
    %v59 = vld [vmem:[#allocation6 + $0x20] sm:$0xff]
    %v60 = vld [vmem:[#allocation6 + $0x28] sm:$0xff]
    %v61 = vld [vmem:[#allocation6 + $0x30] sm:$0xff]
    %v62 = vld [vmem:[#allocation6 + $0x38] sm:$0xff]
    %v63 = vld [vmem:[#allocation6 + $0x40] sm:$0xff]
    %v64 = vld [vmem:[#allocation6 + $0x48] sm:$0xff]
    %v65 = vld [vmem:[#allocation6 + $0x50] sm:$0xff]
    %v66 = vld [vmem:[#allocation6 + $0x58] sm:$0xff]
    %v67 = vld [vmem:[#allocation6 + $0x60] sm:$0xff]
    %v68 = vld [vmem:[#allocation6 + $0x68] sm:$0xff]
    %v69 = vld [vmem:[#allocation6 + $0x70] sm:$0xff]
    %v70 = vld [vmem:[#allocation6 + $0x78] sm:$0xff]
    %71 = vmatpush.msra.mxu0 %v70
    %72 = vmatpush.msra.mxu0 %v69
    %73 = vmatpush.msra.mxu0 %v68
    %74 = vmatpush.msra.mxu0 %v67
    %75 = vmatpush.msra.mxu0 %v66
    %76 = vmatpush.msra.mxu0 %v65
    %77 = vmatpush.msra.mxu0 %v64
    %78 = vmatpush.msra.mxu0 %v63
    %79 = vmatpush.msra.mxu0 %v62
    %80 = vmatpush.msra.mxu0 %v61
    %81 = vmatpush.msra.mxu0 %v60
    %82 = vmatpush.msra.mxu0 %v59
    %83 = vmatpush.msra.mxu0 %v58
    %84 = vmatpush.msra.mxu0 %v57
    %85 = vmatpush.msra.mxu0 %v56
    %86 = vmatpush.msra.mxu0 %v55
    %87 = vmatmul.f32.gmra.mxu0 %v54
    %v88 = vpop.f32.mrf.mxu0
    %v89 = vadd.f32 0.0, %v88
    %90 = vdwg.mxu0
    %v91 = vadd.f32 %v53, %v89
    %92 = vst [vmem:[#allocation2] sm:$0xff] %v91
    // Predicated region
    $region30: #{tpu_custom_call.1} parent=1 // pred_check
      %p93 = pneg %p48
    $region31: #{tpu_custom_call.1} parent=1 // pred_check_branch
      %95 = sbr.rel (%p93) target = $region33
    $region32: #{tpu_custom_call.1} parent=1 // pred_region
      %v96 = vld [vmem:[#allocation2] sm:$0xff]
      %v97 = vld [vmem:[%s2] sm:$0x1]
      %v99 = vperm.slane %v97, 0
      %v101 = vmul.f32 %v96, %v99
      %v102 = vld [vmem:[%s3] sm:$0x1]
      %v104 = vperm.slane %v102, 0
      %v106 = vadd.f32 %v101, %v104
      %v107 = vmax.f32 %v106, 0.0
      %108 = vst [vmem:[#allocation8] sm:$0xff] %v107
    $region33: #{tpu_custom_call.1} parent=1 // pred_fallthru
      _
    // Predicated region
    $region34: #{tpu_custom_call.1} parent=1 // pred_check
      _
    $region35: #{tpu_custom_call.1} parent=1 // pred_check_branch
      %110 = sbr.rel (0) target = $region37
    $region36: #{tpu_custom_call.1} parent=1 // pred_region
      %112 = vsyncadd [#allocation5], 0
      %s114 = sshll.u32 [#allocation8], 4
      %s115 = int_to_ptr.vmem [resolvable:$true] %s114
      %s116 = sshll.u32 %s4, 4
      %s117 = int_to_ptr.hbm [resolvable:$true] %s116
      %119 = dma.vmem_to_hbm [thread:$0]  %s115, 128, %s117, [#allocation5]
    $region37: #{tpu_custom_call.1} parent=1 // pred_fallthru
      _
    // Predicated region
    $region38: #{tpu_custom_call.1} parent=1 // pred_check
      _
    $region39: #{tpu_custom_call.1} parent=1 // pred_check_branch
      %121 = sbr.rel (0) target = $region41
    $region40: #{tpu_custom_call.1} parent=1 // pred_region
      %123 = dma.done [#allocation5], 128
    $region41: #{tpu_custom_call.1} parent=1 // pred_fallthru
      _
    %124 = vsyncpa [#allocation4], 1
    %125 = vsyncpa [#allocation7], 1
    %126 = vsyncpa [#allocation5], 1

</llo_original>
